<compile_context>
chip_gen: v7x
topology: tpu7x:2x2x1
jax: 0.10.0
libtpu: 0.0.40
codegen_flags: <defaults>
</compile_context>

<pallas_src>
import jax
import jax.numpy as jnp
from jax import lax
from jax.experimental import pallas as pl
from jax.experimental.pallas import tpu as pltpu


def _make_wpn_kernel(num_layers: int, negative_slope: float = 0.01):
    """Kernel for a WPN with `num_layers` (BN-folded) linear layers.

    Ref order: (e_ref, [w, b] * num_layers, out_ref)
      e_ref  : (TILE_D, M)   embedding block, native (D, M) layout
      w      : (out, in)     BN-folded weights
      b      : (out, 1)      BN-folded biases (f32, column broadcast)
      out_ref: (K, TILE_D)   final W.T block (lane-dense)
    """

    def kernel(*refs):
        e_ref = refs[0]
        out_ref = refs[-1]
        params = refs[1:-1]

        h = None
        for l in range(num_layers):
            w = params[2 * l][...]                        # (out, in)
            b = params[2 * l + 1][...]                    # (out, 1)
            if l == 0:
                # Contract the embedding axis (last dim of BOTH operands) so E
                # is consumed in its native (D, M) layout; result is (H, TILE_D)
                # with D on lanes.  f32 accumulation on the MXU.
                h = lax.dot_general(
                    w, e_ref[...].astype(w.dtype),
                    (((1,), (1,)), ((), ())),
                    preferred_element_type=jnp.float32) + b
            else:
                h = jnp.dot(w, h.astype(w.dtype),
                            preferred_element_type=jnp.float32) + b
            if l < num_layers - 1:
                # LeakyReLU (slope in (0,1) -> max is equivalent, one VALU op).
                h = jnp.maximum(h, negative_slope * h)
                # BatchNorm1d (eval) folded into the next layer's weight/bias.
                # Dropout(0.2): identity in eval mode.
        out_ref[...] = jnp.tanh(h).astype(out_ref.dtype)  # (K, TILE_D) lane-dense

    return kernel


def _fold_batchnorm(hidden_params, last_w, last_b, bn_eps=1e-5):
    """Fold each eval-mode BN into the next Linear: returns [(w, b), ...] f32."""
    f32 = jnp.float32
    folded = []
    prev_scale = None
    prev_shift = None
    for p in hidden_params:
        w = jnp.asarray(p["w"], f32)                       # (out, in)
        b = jnp.asarray(p["b"], f32)                       # (out,)
        if prev_scale is not None:
            b = b + w @ prev_shift
            w = w * prev_scale[None, :]
        folded.append((w, b))
        scale = jnp.asarray(p["gamma"], f32) * lax.rsqrt(
            jnp.asarray(p["running_var"], f32) + bn_eps)
        shift = jnp.asarray(p["beta"], f32) - jnp.asarray(
            p["running_mean"], f32) * scale
        prev_scale, prev_shift = scale, shift
    w = jnp.asarray(last_w, f32)
    b = jnp.asarray(last_b, f32)
    if prev_scale is not None:
        b = b + w @ prev_shift
        w = w * prev_scale[None, :]
    folded.append((w, b))
    return folded


def _vmem_estimate(M, K, tile_d, folded, act_itemsize):
    """Rough double-buffered VMEM footprint (bytes) for one grid step."""
    est = 2 * M * tile_d * act_itemsize + 2 * K * tile_d * 4   # E block + out block
    for w, b in folded:
        # weights double-buffered; (out,1) bias pads to an (8k,128) VMEM tile
        est += 2 * (w.size * act_itemsize + max(b.shape[0], 8) * 128 * 4)
    h_max = max([M, K] + [w.shape[0] for w, _ in folded])
    est += 4 * h_max * tile_d * 4                              # live f32 intermediates
    return est


def wpn_forward(embedding_matrix, hidden_params, last_w, last_b,
                *, compute_dtype=jnp.float32, max_tile_d=512,
                vmem_budget=12 << 20):
    """WPN forward (eval mode). Returns W.T of shape (K, D).

    hidden_params: list of dicts with keys w (out,in), b, gamma, beta,
                   running_mean, running_var.
    last_w: (K, in), last_b: (K,)
    compute_dtype: dtype fed to the MXU for E / weights (accumulation is f32).
                   bf16 halves HBM traffic and doubles MXU rate on v6e/v7x;
                   f32 keeps bit-tight agreement with the f32 reference.
    """
    D, M = embedding_matrix.shape
    K = last_w.shape[0]
    act_itemsize = jnp.dtype(compute_dtype).itemsize

    # --- glue: fold BN into the adjacent linears (pure trace-time algebra) ---
    folded = _fold_batchnorm(hidden_params, last_w, last_b)
    num_layers = len(folded)

    # --- choose D-tile: big enough to pipeline well, small enough for VMEM ---
    if D <= max_tile_d:
        tile_d = D                     # one block == full feature axis
    else:
        tile_d = max_tile_d            # multiple of 128; boundary block masked
        while tile_d > 128 and _vmem_estimate(M, K, tile_d, folded,
                                              act_itemsize) > vmem_budget:
            tile_d //= 2
    n_tiles = pl.cdiv(D, tile_d)

    # --- build kernel inputs: embedding stays in native (D, M) layout ---
    e = jnp.asarray(embedding_matrix).astype(compute_dtype)        # (D, M)
    flat_inputs = [e]
    in_specs = [pl.BlockSpec((tile_d, M), lambda i: (i, 0))]
    for w, b in folded:
        out_dim, in_dim = w.shape
        flat_inputs.append(w.astype(compute_dtype))                # (out, in)
        flat_inputs.append(b[:, None])                             # (out, 1) f32
        in_specs.append(pl.BlockSpec((out_dim, in_dim), lambda i: (0, 0)))
        in_specs.append(pl.BlockSpec((out_dim, 1), lambda i: (0, 0)))

    kernel = _make_wpn_kernel(num_layers)

    vmem_limit = int(min(32 << 20,
                         max(16 << 20,
                             2 * _vmem_estimate(M, K, tile_d, folded,
                                                act_itemsize))))

    out = pl.pallas_call(
        kernel,
        out_shape=jax.ShapeDtypeStruct((K, D), jnp.float32),
        grid=(n_tiles,),
        in_specs=in_specs,
        out_specs=pl.BlockSpec((K, tile_d), lambda i: (0, i)),
        compiler_params=pltpu.CompilerParams(
            dimension_semantics=("parallel",),
            vmem_limit_bytes=vmem_limit),
    )(*flat_inputs)

    # Kernel already produced W.T (K on sublanes, D on lanes).
    return out


def _init_params(key, embedding_size, wpn_layers):
    """Deterministic parameter init mirroring the module's __init__ shapes."""
    hidden_params = []
    prev = embedding_size
    keys = jax.random.split(key, 2 * len(wpn_layers))
    last_w = last_b = None
    for i, dim in enumerate(wpn_layers):
        kw, kb = keys[2 * i], keys[2 * i + 1]
        if i == len(wpn_layers) - 1:
            # last layer: uniform_(-0.01, 0.01)
            last_w = jax.random.uniform(kw, (dim, prev), jnp.float32,
                                        minval=-0.01, maxval=0.01)
            bound = 1.0 / jnp.sqrt(prev)
            last_b = jax.random.uniform(kb, (dim,), jnp.float32,
                                        minval=-bound, maxval=bound)
        else:
            # kaiming_normal_(a=0.01, mode='fan_out', leaky_relu)
            a = 0.01
            gain = (2.0 / (1.0 + a * a)) ** 0.5
            std = gain / (dim ** 0.5)
            w = std * jax.random.normal(kw, (dim, prev), jnp.float32)
            bound = 1.0 / jnp.sqrt(prev)
            b = jax.random.uniform(kb, (dim,), jnp.float32,
                                   minval=-bound, maxval=bound)
            hidden_params.append(dict(
                w=w, b=b,
                gamma=jnp.ones((dim,), jnp.float32),
                beta=jnp.zeros((dim,), jnp.float32),
                running_mean=jnp.zeros((dim,), jnp.float32),
                running_var=jnp.ones((dim,), jnp.float32),
            ))
        prev = dim
    return hidden_params, last_w, last_b


def _reference(embedding_matrix, hidden_params, last_w, last_b):
    """Pure-JAX reference of the same eval-mode forward (un-folded BN)."""
    h = embedding_matrix.astype(jnp.float32)
    for p in hidden_params:
        h = h @ p["w"].T + p["b"]
        h = jnp.where(h > 0, h, 0.01 * h)
        h = p["gamma"] * (h - p["running_mean"]) / jnp.sqrt(
            p["running_var"] + 1e-5) + p["beta"]
    h = jnp.tanh(h @ last_w.T + last_b)
    return h.T


if __name__ == "__main__":
    key = jax.random.PRNGKey(0)

    # --- case 1: tiny shapes, single D-block equal to the full feature axis ---
    k_emb, k_par, k_emb2, k_par2 = jax.random.split(key, 4)
    D, M = 16, 32                 # features, embedding size
    wpn_layers = (32, 16)         # one hidden block + final layer of size K=16

    embedding_matrix = jax.random.normal(k_emb, (D, M), jnp.float32)
    hidden_params, last_w, last_b = _init_params(k_par, M, wpn_layers)

    out = wpn_forward(embedding_matrix, hidden_params, last_w, last_b)
    out = jax.block_until_ready(out)
    ref = _reference(embedding_matrix, hidden_params, last_w, last_b)
    assert out.shape == (wpn_layers[-1], D), out.shape
    assert jnp.allclose(out, ref, atol=5e-5, rtol=1e-5), "mismatch vs reference (case 1)"

    # --- case 2: multi-tile grid with a partial (masked) boundary block ---
    D2, M2 = 777, 48
    wpn_layers2 = (64, 33)
    embedding_matrix2 = jax.random.normal(k_emb2, (D2, M2), jnp.float32)
    hidden_params2, last_w2, last_b2 = _init_params(k_par2, M2, wpn_layers2)

    out2 = wpn_forward(embedding_matrix2, hidden_params2, last_w2, last_b2,
                       max_tile_d=256)
    out2 = jax.block_until_ready(out2)
    ref2 = _reference(embedding_matrix2, hidden_params2, last_w2, last_b2)
    assert out2.shape == (wpn_layers2[-1], D2), out2.shape
    assert jnp.allclose(out2, ref2, atol=5e-5, rtol=1e-5), "mismatch vs reference (case 2)"

    print("KERNEL_OK")
</pallas_src>

<mosaic_0001>
module attributes {stable_mosaic.version = 11 : i64} {
  func.func @kernel(%arg0: i32, %arg1: memref<16x32xf32, #tpu.memory_space<vmem>>, %arg2: memref<32x32xf32, #tpu.memory_space<vmem>>, %arg3: memref<32x1xf32, #tpu.memory_space<vmem>>, %arg4: memref<16x32xf32, #tpu.memory_space<vmem>>, %arg5: memref<16x1xf32, #tpu.memory_space<vmem>>, %arg6: memref<16x16xf32, #tpu.memory_space<vmem>>) attributes {dimension_semantics = [#tpu.dimension_semantics<parallel>], iteration_bounds = array<i64: 1>, scalar_prefetch = 0 : i64, scratch_operands = 0 : i64, tpu.core_type = #tpu.core_type<tc>, window_params = [{transform_indices = @transform_0, window_bounds = array<i64: 16, 32>}, {pipeline_mode = #tpu.pipeline_mode<synchronous>, transform_indices = @transform_1, window_bounds = array<i64: 32, 32>}, {pipeline_mode = #tpu.pipeline_mode<synchronous>, transform_indices = @transform_2, window_bounds = array<i64: 32, 1>}, {pipeline_mode = #tpu.pipeline_mode<synchronous>, transform_indices = @transform_3, window_bounds = array<i64: 16, 32>}, {pipeline_mode = #tpu.pipeline_mode<synchronous>, transform_indices = @transform_4, window_bounds = array<i64: 16, 1>}, {transform_indices = @transform_5, window_bounds = array<i64: 16, 16>}]} {
    %c0 = arith.constant 0 : index
    %c0_0 = arith.constant 0 : index
    %0 = vector.load %arg2[%c0, %c0_0] : memref<32x32xf32, #tpu.memory_space<vmem>>, vector<32x32xf32>
    %c0_1 = arith.constant 0 : index
    %c0_2 = arith.constant 0 : index
    %1 = vector.load %arg3[%c0_1, %c0_2] : memref<32x1xf32, #tpu.memory_space<vmem>>, vector<32x1xf32>
    %c0_3 = arith.constant 0 : index
    %c0_4 = arith.constant 0 : index
    %2 = vector.load %arg1[%c0_3, %c0_4] : memref<16x32xf32, #tpu.memory_space<vmem>>, vector<16x32xf32>
    %cst = arith.constant dense<0.000000e+00> : vector<32x16xf32>
    %3 = tpu.matmul %0, %2, %cst {dimension_numbers = #tpu.dot_dimension_numbers<[1], [1], [0], [0], [0, 0, 1, 0], [], []>} : vector<32x32xf32>, vector<16x32xf32>, vector<32x16xf32> -> vector<32x16xf32>
    %4 = vector.broadcast %1 : vector<32x1xf32> to vector<32x16xf32>
    %5 = arith.addf %3, %4 : vector<32x16xf32>
    %cst_5 = arith.constant 0.00999999977 : f32
    %6 = vector.broadcast %cst_5 : f32 to vector<32x16xf32>
    %7 = arith.mulf %6, %5 : vector<32x16xf32>
    %8 = arith.maximumf %5, %7 : vector<32x16xf32>
    %c0_6 = arith.constant 0 : index
    %c0_7 = arith.constant 0 : index
    %9 = vector.load %arg4[%c0_6, %c0_7] : memref<16x32xf32, #tpu.memory_space<vmem>>, vector<16x32xf32>
    %c0_8 = arith.constant 0 : index
    %c0_9 = arith.constant 0 : index
    %10 = vector.load %arg5[%c0_8, %c0_9] : memref<16x1xf32, #tpu.memory_space<vmem>>, vector<16x1xf32>
    %cst_10 = arith.constant dense<0.000000e+00> : vector<16x16xf32>
    %11 = tpu.matmul %9, %8, %cst_10 {dimension_numbers = #tpu.dot_dimension_numbers<[1], [0], [0], [1], [0, 0, 1, 1], [], []>} : vector<16x32xf32>, vector<32x16xf32>, vector<16x16xf32> -> vector<16x16xf32>
    %12 = vector.broadcast %10 : vector<16x1xf32> to vector<16x16xf32>
    %13 = arith.addf %11, %12 : vector<16x16xf32>
    %14 = math.tanh %13 : vector<16x16xf32>
    %c0_11 = arith.constant 0 : index
    %c0_12 = arith.constant 0 : index
    %15 = vector.load %arg6[%c0_11, %c0_12] : memref<16x16xf32, #tpu.memory_space<vmem>>, vector<16x16xf32>
    tpu.vector_store %arg6[%c0_11, %c0_12], %14 {strides = array<i32>} : memref<16x16xf32, #tpu.memory_space<vmem>>, vector<16x16xf32>,
    return
  }
  func.func @transform_0(%arg0: i32) -> (i32, i32) {
    %c0_i32 = arith.constant 0 : i32
    %c0_i32_0 = arith.constant 0 : i32
    return %arg0, %c0_i32 : i32, i32
  }
  func.func @transform_1(%arg0: i32) -> (i32, i32) {
    %c0_i32 = arith.constant 0 : i32
    %c0_i32_0 = arith.constant 0 : i32
    %c0_i32_1 = arith.constant 0 : i32
    return %c0_i32, %c0_i32_0 : i32, i32
  }
  func.func @transform_2(%arg0: i32) -> (i32, i32) {
    %c0_i32 = arith.constant 0 : i32
    %c0_i32_0 = arith.constant 0 : i32
    %c0_i32_1 = arith.constant 0 : i32
    return %c0_i32, %c0_i32_0 : i32, i32
  }
  func.func @transform_3(%arg0: i32) -> (i32, i32) {
    %c0_i32 = arith.constant 0 : i32
    %c0_i32_0 = arith.constant 0 : i32
    %c0_i32_1 = arith.constant 0 : i32
    return %c0_i32, %c0_i32_0 : i32, i32
  }
  func.func @transform_4(%arg0: i32) -> (i32, i32) {
    %c0_i32 = arith.constant 0 : i32
    %c0_i32_0 = arith.constant 0 : i32
    %c0_i32_1 = arith.constant 0 : i32
    return %c0_i32, %c0_i32_0 : i32, i32
  }
  func.func @transform_5(%arg0: i32) -> (i32, i32) {
    %c0_i32 = arith.constant 0 : i32
    %c0_i32_0 = arith.constant 0 : i32
    return %c0_i32, %arg0 : i32, i32
  }
}

</mosaic_0001>

<llo_original>
// kernel: tpu_custom_call.1
$region0: #{tpu_custom_call.1}
  #allocation0 [shape = 'u32[]', space=smem, size = 0x4, offset = 0x4, fixed_abs, tag = 'smem constant byte address 0x4 - core index']
  #allocation1 [shape = 'u32[144,128]{1,0:T(1,128)}', space=vmem, size = 0x12000, scoped, tag = 'internal scratch']
  %s0 = inlined_call_operand.vmem [shape: f32[16,32], index: 0, kind: input, shape index: {}]
  %s1 = inlined_call_operand.vmem [shape: f32[32,32], index: 1, kind: input, shape index: {}]
  %s2 = inlined_call_operand.vmem [shape: f32[32,1], index: 2, kind: input, shape index: {}]
  %s3 = inlined_call_operand.hbm [shape: f32[16,32], index: 3, kind: input, shape index: {}]
  %s4 = inlined_call_operand.vmem [shape: f32[16,1], index: 4, kind: input, shape index: {}]
  %s5 = inlined_call_operand.hbm [shape: f32[16,16], index: 5, kind: output, shape index: {}]
  %s6 = sld [smem:[#allocation0]]
  $region34: #{tpu_custom_call.1} parent=0
    _
  %s8 = ssub.s32 1, %s6
  %s9 = scalar_select 0, %s8, %s6
  $region1: #{tpu_custom_call.1} parent=0
    #allocation2 [shape = 'u8[8192]{0}', space=vmem, size = 0x2000, scoped, tag = 'input window, operand 3, single buffered']
    #allocation3 [shape = 's32[1]{0}', space=sflag, size = 0x4, scoped, tag = 'scoped memory for tpu_custom_call.1']
    #allocation4 [shape = 's32[1]{0}', space=sflag, size = 0x4, scoped, tag = 'scoped memory for tpu_custom_call.1']
    #allocation5 [shape = 'u8[8192]{0}', space=vmem, size = 0x2000, scoped, tag = 'output window, operand 0, single buffered']
    %10 = vsyncpa [#allocation3], 0
    %11 = vsyncpa [#allocation4], 0
    // Predicated region
    $region2: #{tpu_custom_call.1} parent=1 // pred_check
      _
    $region3: #{tpu_custom_call.1} parent=1 // pred_check_branch
      %13 = sbr.rel (0) target = $region5
    $region4: #{tpu_custom_call.1} parent=1 // pred_region
      _
    $region5: #{tpu_custom_call.1} parent=1 // pred_fallthru
      _
    // Predicated region
    $region6: #{tpu_custom_call.1} parent=1 // pred_check
      _
    $region7: #{tpu_custom_call.1} parent=1 // pred_check_branch
      %15 = sbr.rel (0) target = $region9
    $region8: #{tpu_custom_call.1} parent=1 // pred_region
      _
    $region9: #{tpu_custom_call.1} parent=1 // pred_fallthru
      _
    // Predicated region
    $region10: #{tpu_custom_call.1} parent=1 // pred_check
      _
    $region11: #{tpu_custom_call.1} parent=1 // pred_check_branch
      %17 = sbr.rel (0) target = $region13
    $region12: #{tpu_custom_call.1} parent=1 // pred_region
      _
    $region13: #{tpu_custom_call.1} parent=1 // pred_fallthru
      _
    // Predicated region
    $region14: #{tpu_custom_call.1} parent=1 // pred_check
      _
    $region15: #{tpu_custom_call.1} parent=1 // pred_check_branch
      %19 = sbr.rel (0) target = $region17
    $region16: #{tpu_custom_call.1} parent=1 // pred_region
      %s21 = ssub.s32 256, 256
      %22 = vsyncadd [#allocation3], %s21
      %s23 = sshll.u32 [#allocation2], 4
      %s24 = int_to_ptr.vmem [resolvable:$true] %s23
      %29 = dma.hbm_to_vmem [thread:$0]  %s3, 256, %s24, [#allocation3], 128, 128, 8
    $region17: #{tpu_custom_call.1} parent=1 // pred_fallthru
      _
    // Predicated region
    $region18: #{tpu_custom_call.1} parent=1 // pred_check
      _
    $region19: #{tpu_custom_call.1} parent=1 // pred_check_branch
      %31 = sbr.rel (0) target = $region21
    $region20: #{tpu_custom_call.1} parent=1 // pred_region
      _
    $region21: #{tpu_custom_call.1} parent=1 // pred_fallthru
      _
    // Predicated region
    $region22: #{tpu_custom_call.1} parent=1 // pred_check
      _
    $region23: #{tpu_custom_call.1} parent=1 // pred_check_branch
      %33 = sbr.rel (0) target = $region25
    $region24: #{tpu_custom_call.1} parent=1 // pred_region
      %34 = dma.done [#allocation3], 256
    $region25: #{tpu_custom_call.1} parent=1 // pred_fallthru
      _
    %v35 = vld [vmem:[%s1] sm:$0xff]
    %v36 = vld [vmem:[%s1 + $0x8] sm:$0xff]
    %v37 = vld [vmem:[%s1 + $0x10] sm:$0xff]
    %v38 = vld [vmem:[%s1 + $0x18] sm:$0xff]
    %v39 = vld [vmem:[%s2] sm:$0xff]
    %v40 = vld [vmem:[%s2 + $0x8] sm:$0xff]
    %v41 = vld [vmem:[%s2 + $0x10] sm:$0xff]
    %v42 = vld [vmem:[%s2 + $0x18] sm:$0xff]
    %v43 = vld [vmem:[%s0] sm:$0xff]
    %v44 = vld [vmem:[%s0 + $0x8] sm:$0xff]
    %46 = vset.pattern.permute.xlu0 0
    %47 = vperm.xlu0 %46, %v39
    %v48 = vpop.permute.xlu0 %47
    %51 = vset.pattern.permute.xlu0 0
    %52 = vperm.xlu0 %51, %v40
    %v53 = vpop.permute.xlu0 %52
    %56 = vset.pattern.permute.xlu0 0
    %57 = vperm.xlu0 %56, %v41
    %v58 = vpop.permute.xlu0 %57
    %61 = vset.pattern.permute.xlu0 0
    %62 = vperm.xlu0 %61, %v42
    %v63 = vpop.permute.xlu0 %62
    %vm65 = vcmask 261120
    %v67 = vsel %vm65, %v35, 0
    %v70 = vsel %vm65, %v36, 0
    %v73 = vsel %vm65, %v37, 0
    %v76 = vsel %vm65, %v38, 0
    %v79 = vsel %vm65, %v43, 0
    %v82 = vsel %vm65, %v44, 0
    %84 = vmatprep.subr.mxu0 0.0
    %85 = vmatpush1.xpose.msra.mxu0 %v79
    %86 = vmatprep.subr.mxu0 0.0
    %87 = vmatpush1.xpose.msra.mxu0 %v82
    %88 = vmatprep.subr.mxu0 0.0
    %89 = vmatpush1.xpose.msra.mxu0 0.0
    %90 = vmatprep.subr.mxu0 0.0
    %91 = vmatpush1.xpose.msra.mxu0 0.0
    %92 = vmatprep.subr.mxu0 0.0
    %93 = vmatpush1.xpose.msra.mxu0 0.0
    %94 = vmatprep.subr.mxu0 0.0
    %95 = vmatpush1.xpose.msra.mxu0 0.0
    %96 = vmatprep.subr.mxu0 0.0
    %97 = vmatpush1.xpose.msra.mxu0 0.0
    %98 = vmatprep.subr.mxu0 0.0
    %99 = vmatpush1.xpose.msra.mxu0 0.0
    %100 = vmatprep.subr.mxu0 0.0
    %101 = vmatpush1.xpose.msra.mxu0 0.0
    %102 = vmatprep.subr.mxu0 0.0
    %103 = vmatpush1.xpose.msra.mxu0 0.0
    %104 = vmatprep.subr.mxu0 0.0
    %105 = vmatpush1.xpose.msra.mxu0 0.0
    %106 = vmatprep.subr.mxu0 0.0
    %107 = vmatpush1.xpose.msra.mxu0 0.0
    %108 = vmatprep.subr.mxu0 0.0
    %109 = vmatpush1.xpose.msra.mxu0 0.0
    %110 = vmatprep.subr.mxu0 0.0
    %111 = vmatpush1.xpose.msra.mxu0 0.0
    %112 = vmatprep.subr.mxu0 0.0
    %113 = vmatpush1.xpose.msra.mxu0 0.0
    %114 = vmatprep.subr.mxu0 0.0
    %115 = vmatpush1.xpose.msra.mxu0 0.0
    %116 = vmatprep.subr.mxu0 0.0
    %117 = vmatpush1.xpose.msra.mxu0 0.0
    %118 = vmatprep.subr.mxu0 0.0
    %119 = vmatpush1.xpose.msra.mxu0 0.0
    %120 = vmatprep.subr.mxu0 0.0
    %121 = vmatpush1.xpose.msra.mxu0 0.0
    %122 = vmatprep.subr.mxu0 0.0
    %123 = vmatpush1.xpose.msra.mxu0 0.0
    %124 = vmatprep.subr.mxu0 0.0
    %125 = vmatpush1.xpose.msra.mxu0 0.0
    %126 = vmatprep.subr.mxu0 0.0
    %127 = vmatpush1.xpose.msra.mxu0 0.0
    %128 = vmatprep.subr.mxu0 0.0
    %129 = vmatpush1.xpose.msra.mxu0 0.0
    %130 = vmatprep.subr.mxu0 0.0
    %131 = vmatpush1.xpose.msra.mxu0 0.0
    %132 = vmatprep.subr.mxu0 0.0
    %133 = vmatpush1.xpose.msra.mxu0 0.0
    %134 = vmatprep.subr.mxu0 0.0
    %135 = vmatpush1.xpose.msra.mxu0 0.0
    %136 = vmatprep.subr.mxu0 0.0
    %137 = vmatpush1.xpose.msra.mxu0 0.0
    %138 = vmatprep.subr.mxu0 0.0
    %139 = vmatpush1.xpose.msra.mxu0 0.0
    %140 = vmatprep.subr.mxu0 0.0
    %141 = vmatpush1.xpose.msra.mxu0 0.0
    %142 = vmatprep.subr.mxu0 0.0
    %143 = vmatpush1.xpose.msra.mxu0 0.0
    %144 = vmatprep.subr.mxu0 0.0
    %145 = vmatpush1.xpose.msra.mxu0 0.0
    %146 = vmatprep.subr.mxu0 0.0
    %147 = vmatpush1.xpose.msra.mxu0 0.0
    %148 = vmatprep.mubr.f32.mxu0 0.0
    %149 = vmatmul.mubr.f32.gmra.mrb[0].mxu0 %v67
    %v150 = vpop.f32.mrb[0].mxu0
    %v151 = vadd.f32 %v48, %v150
    %v152 = vpop.f32.mrb[0].mxu0
    %153 = vmatprep.mubr.f32.mxu0 0.0
    %154 = vmatmul.mubr.f32.gmra.mrb[0].mxu0 %v70
    %v155 = vpop.f32.mrb[0].mxu0
    %v156 = vadd.f32 %v53, %v155
    %v157 = vpop.f32.mrb[0].mxu0
    %158 = vmatprep.mubr.f32.mxu0 0.0
    %159 = vmatmul.mubr.f32.gmra.mrb[0].mxu0 %v73
    %v160 = vpop.f32.mrb[0].mxu0
    %v161 = vadd.f32 %v58, %v160
    %v162 = vpop.f32.mrb[0].mxu0
    %163 = vmatprep.mubr.f32.mxu0 0.0
    %164 = vmatmul.mubr.f32.gmra.mrb[0].mxu0 %v76
    %v165 = vpop.f32.mrb[0].mxu0
    %v166 = vadd.f32 %v63, %v165
    %v167 = vpop.f32.mrb[0].mxu0
    %168 = vdwg.mxu0
    %v169 = vmul.f32 %v151, 0.01
    %v170 = vmul.f32 %v156, 0.01
    %v171 = vmul.f32 %v161, 0.01
    %v172 = vmul.f32 %v166, 0.01
    %v173 = vmax.f32 %v151, %v169
    %v174 = vmax.f32 %v156, %v170
    %v175 = vmax.f32 %v161, %v171
    %v176 = vmax.f32 %v166, %v172
    %v177 = vld [vmem:[#allocation2] sm:$0xff]
    %v178 = vld [vmem:[#allocation2 + $0x8] sm:$0xff]
    %v179 = vld [vmem:[%s4] sm:$0xff]
    %v180 = vld [vmem:[%s4 + $0x8] sm:$0xff]
    %182 = vset.pattern.permute.xlu0 0
    %183 = vperm.xlu0 %182, %v179
    %v184 = vpop.permute.xlu0 %183
    %187 = vset.pattern.permute.xlu0 0
    %188 = vperm.xlu0 %187, %v180
    %v189 = vpop.permute.xlu0 %188
    %v192 = vsel %vm65, %v177, 0
    %v195 = vsel %vm65, %v178, 0
    %197 = vmatprep.subr.mxu0 0.0
    %198 = vmatpush1.msra.mxu0 %v173
    %199 = vmatprep.subr.mxu0 0.0
    %200 = vmatpush1.msra.mxu0 %v174
    %201 = vmatprep.subr.mxu0 0.0
    %202 = vmatpush1.msra.mxu0 %v175
    %203 = vmatprep.subr.mxu0 0.0
    %204 = vmatpush1.msra.mxu0 %v176
    %205 = vmatprep.subr.mxu0 0.0
    %206 = vmatpush1.msra.mxu0 0.0
    %207 = vmatprep.subr.mxu0 0.0
    %208 = vmatpush1.msra.mxu0 0.0
    %209 = vmatprep.subr.mxu0 0.0
    %210 = vmatpush1.msra.mxu0 0.0
    %211 = vmatprep.subr.mxu0 0.0
    %212 = vmatpush1.msra.mxu0 0.0
    %213 = vmatprep.subr.mxu0 0.0
    %214 = vmatpush1.msra.mxu0 0.0
    %215 = vmatprep.subr.mxu0 0.0
    %216 = vmatpush1.msra.mxu0 0.0
    %217 = vmatprep.subr.mxu0 0.0
    %218 = vmatpush1.msra.mxu0 0.0
    %219 = vmatprep.subr.mxu0 0.0
    %220 = vmatpush1.msra.mxu0 0.0
    %221 = vmatprep.subr.mxu0 0.0
    %222 = vmatpush1.msra.mxu0 0.0
    %223 = vmatprep.subr.mxu0 0.0
    %224 = vmatpush1.msra.mxu0 0.0
    %225 = vmatprep.subr.mxu0 0.0
    %226 = vmatpush1.msra.mxu0 0.0
    %227 = vmatprep.subr.mxu0 0.0
    %228 = vmatpush1.msra.mxu0 0.0
    %229 = vmatprep.subr.mxu0 0.0
    %230 = vmatpush1.msra.mxu0 0.0
    %231 = vmatprep.subr.mxu0 0.0
    %232 = vmatpush1.msra.mxu0 0.0
    %233 = vmatprep.subr.mxu0 0.0
    %234 = vmatpush1.msra.mxu0 0.0
    %235 = vmatprep.subr.mxu0 0.0
    %236 = vmatpush1.msra.mxu0 0.0
    %237 = vmatprep.subr.mxu0 0.0
    %238 = vmatpush1.msra.mxu0 0.0
    %239 = vmatprep.subr.mxu0 0.0
    %240 = vmatpush1.msra.mxu0 0.0
    %241 = vmatprep.subr.mxu0 0.0
    %242 = vmatpush1.msra.mxu0 0.0
    %243 = vmatprep.subr.mxu0 0.0
    %244 = vmatpush1.msra.mxu0 0.0
    %245 = vmatprep.subr.mxu0 0.0
    %246 = vmatpush1.msra.mxu0 0.0
    %247 = vmatprep.subr.mxu0 0.0
    %248 = vmatpush1.msra.mxu0 0.0
    %249 = vmatprep.subr.mxu0 0.0
    %250 = vmatpush1.msra.mxu0 0.0
    %251 = vmatprep.subr.mxu0 0.0
    %252 = vmatpush1.msra.mxu0 0.0
    %253 = vmatprep.subr.mxu0 0.0
    %254 = vmatpush1.msra.mxu0 0.0
    %255 = vmatprep.subr.mxu0 0.0
    %256 = vmatpush1.msra.mxu0 0.0
    %257 = vmatprep.subr.mxu0 0.0
    %258 = vmatpush1.msra.mxu0 0.0
    %259 = vmatprep.subr.mxu0 0.0
    %260 = vmatpush1.msra.mxu0 0.0
    %261 = vmatprep.mubr.f32.mxu0 0.0
    %262 = vmatmul.mubr.f32.gmra.mrb[0].mxu0 %v192
    %v263 = vpop.f32.mrb[0].mxu0
    %v264 = vadd.f32 %v184, %v263
    %v265 = vpop.f32.mrb[0].mxu0
    %266 = vmatprep.mubr.f32.mxu0 0.0
    %267 = vmatmul.mubr.f32.gmra.mrb[0].mxu0 %v195
    %v268 = vpop.f32.mrb[0].mxu0
    %v269 = vadd.f32 %v189, %v268
    %v270 = vpop.f32.mrb[0].mxu0
    %271 = vdwg.mxu0
    %v272 = vtanh.pop %v264
    %v273 = vtanh.pop %v269
    %vm274 = vcmask 130048
    %275 = vst.msk [vmem:[#allocation5] sm:$0xff] %vm274, %v272
    %276 = vst.msk [vmem:[#allocation5 + $0x8] sm:$0xff] %vm274, %v273
    // Predicated region
    $region26: #{tpu_custom_call.1} parent=1 // pred_check
      _
    $region27: #{tpu_custom_call.1} parent=1 // pred_check_branch
      %278 = sbr.rel (0) target = $region29
    $region28: #{tpu_custom_call.1} parent=1 // pred_region
      %s280 = ssub.s32 256, 256
      %281 = vsyncadd [#allocation4], %s280
      %s282 = sshll.u32 [#allocation5], 4
      %s283 = int_to_ptr.vmem [resolvable:$true] %s282
      %288 = dma.vmem_to_hbm [thread:$0]  %s283, 256, %s5, [#allocation4], 128, 128, 8
    $region29: #{tpu_custom_call.1} parent=1 // pred_fallthru
      _
    // Predicated region
    $region30: #{tpu_custom_call.1} parent=1 // pred_check
      _
    $region31: #{tpu_custom_call.1} parent=1 // pred_check_branch
      %290 = sbr.rel (0) target = $region33
    $region32: #{tpu_custom_call.1} parent=1 // pred_region
      %291 = dma.done [#allocation4], 256
    $region33: #{tpu_custom_call.1} parent=1 // pred_fallthru
      _
    %292 = vsyncpa [#allocation3], 1
    %293 = vsyncpa [#allocation4], 1

</llo_original>
